<compile_context>
chip_gen: v5e
topology: v5e:2x2
jax: 0.10.0
libtpu: 0.0.40
codegen_flags: <defaults>
</compile_context>

<pallas_src>
import functools

import jax
import jax.numpy as jnp
from jax import lax
from jax.experimental import pallas as pl
from jax.experimental.pallas import tpu as pltpu

_LANE = 128


def _round_up(x, m):
    return (x + m - 1) // m * m


def _pad_cols(x, n):
    return jnp.pad(x, ((0, 0), (0, n - x.shape[1])))


# --------------------------------------------------------------------------
# Fused forward kernel (single block: all operands VMEM-resident)
# --------------------------------------------------------------------------
def _fused_forward_kernel(
    ibatch_ref, ida_ref, idb_ref, idc_ref,
    drug_feat_ref, drug_adj_ref, gexpr_ref, adj_ref,
    w_drug_ref, b_drug_ref, w_cell_ref, b_cell_ref,
    w_graph_ref, b_graph_ref,
    w_proj1_ref, b_proj1_ref, w_proj2_ref, b_proj2_ref,
    w_dec1_ref, b_dec1_ref, w_dec2_ref, b_dec2_ref,
    res_ref, proj_ref,
    *, n_drug,
):
    f32 = jnp.float32
    bf16 = jnp.bfloat16

    def mm(a, b):
        # bf16 MXU operands, f32 accumulation; epilogues (bias/ReLU/sigmoid)
        # stay f32 (v5e has no bf16 VPU/EUP; v6e/v7x get 2x bf16 MXU rate).
        return jnp.dot(a.astype(bf16), b.astype(bf16),
                       preferred_element_type=f32)

    # ---- bio_encoder, drug branch: GCN + segment-mean pool ---------------
    ax = mm(drug_adj_ref[...], drug_feat_ref[...])                    # (Nn, F)
    node_embed = jnp.maximum(mm(ax, w_drug_ref[...]) + b_drug_ref[...], 0.0)

    n_nodes = drug_adj_ref.shape[0]
    seg_iota = lax.broadcasted_iota(jnp.int32, (n_drug, n_nodes), 0)
    onehot = (seg_iota == ibatch_ref[...]).astype(f32)                # (Nd, Nn)
    counts = jnp.maximum(jnp.sum(onehot, axis=1, keepdims=True), 1.0)
    drug_embed = mm(onehot / counts, node_embed)                      # (Nd, P)

    # ---- bio_encoder, cell-line branch: MLP on gene expression -----------
    cell_embed = jnp.maximum(
        mm(gexpr_ref[...], w_cell_ref[...]) + b_cell_ref[...], 0.0)   # (Nc, P)

    # ---- graph_encoder: GCN over merged heterogeneous graph --------------
    merge_embed = jnp.concatenate([drug_embed, cell_embed], axis=0)   # (Ng, P)
    gax = mm(adj_ref[...], merge_embed)
    graph_embed = jnp.maximum(mm(gax, w_graph_ref[...]) + b_graph_ref[...], 0.0)

    # ---- projection head: Linear -> ReLU -> Linear (lane-padded output) --
    ph = jnp.maximum(mm(graph_embed, w_proj1_ref[...]) + b_proj1_ref[...], 0.0)
    proj_ref[...] = mm(ph, w_proj2_ref[...]) + b_proj2_ref[...]

    # ---- decoder: in-VMEM row gathers as one-hot MXU matmuls -------------
    n_graph = adj_ref.shape[0]
    batch = ida_ref.shape[0]
    cols = lax.broadcasted_iota(jnp.int32, (batch, n_graph), 1)
    za = mm((cols == ida_ref[...]).astype(f32), graph_embed)          # (B, P)
    zb = mm((cols == idb_ref[...]).astype(f32), graph_embed)
    zc = mm((cols == idc_ref[...]).astype(f32), graph_embed)

    # concat([za, zb, zc], axis=1) @ w_dec1 done as 3 partial matmuls
    # (avoids a lane-axis concat inside the kernel).
    P = w_drug_ref.shape[1]
    h = (mm(za, w_dec1_ref[0:P, :]) + mm(zb, w_dec1_ref[P:2 * P, :])
         + mm(zc, w_dec1_ref[2 * P:3 * P, :]) + b_dec1_ref[...])
    h = jnp.maximum(h, 0.0)
    res_ref[...] = jax.nn.sigmoid(mm(h, w_dec2_ref[...]) + b_dec2_ref[...])


# --------------------------------------------------------------------------
# KnowSynergyCL forward (single fused pallas_call)
# --------------------------------------------------------------------------
def know_synergy_forward(params, drug_feature, drug_adj, ibatch, gexpr_data,
                         adj, druga_id, drugb_id, cellline_id, n_drug):
    p = params
    proj_dim = p["w_proj1"].shape[1]
    n_graph = adj.shape[0]
    batch = druga_id.shape[0]

    # Lane-dense output slabs: pad the final-layer weight columns to 128 so
    # the HBM stores are unmasked full-lane vst's; slice back in the wrapper.
    proj_pad = max(_LANE, _round_up(proj_dim, _LANE))
    res_pad = _LANE
    w_proj2_p = _pad_cols(p["w_proj2"], proj_pad)
    b_proj2_p = _pad_cols(p["b_proj2"], proj_pad)
    w_dec2_p = _pad_cols(p["w_dec2"], res_pad)
    b_dec2_p = _pad_cols(p["b_dec2"], res_pad)

    # Index vectors as small 2-D int32 VMEM operands (compared against a 2-D
    # iota in-kernel; no host-side one-hot construction, no extra launches).
    ibatch2 = ibatch.astype(jnp.int32).reshape(1, -1)
    ida = druga_id.astype(jnp.int32).reshape(-1, 1)
    idb = drugb_id.astype(jnp.int32).reshape(-1, 1)
    idc = cellline_id.astype(jnp.int32).reshape(-1, 1)

    vmem = pl.BlockSpec(memory_space=pltpu.MemorySpace.VMEM)
    res_p, proj_p = pl.pallas_call(
        functools.partial(_fused_forward_kernel, n_drug=n_drug),
        out_shape=(jax.ShapeDtypeStruct((batch, res_pad), jnp.float32),
                   jax.ShapeDtypeStruct((n_graph, proj_pad), jnp.float32)),
        in_specs=[vmem] * 22,
        out_specs=(vmem, vmem),
    )(ibatch2, ida, idb, idc,
      drug_feature, drug_adj, gexpr_data, adj,
      p["w_drug"], p["b_drug"], p["w_cell"], p["b_cell"],
      p["w_graph"], p["b_graph"],
      p["w_proj1"], p["b_proj1"], w_proj2_p, b_proj2_p,
      p["w_dec1"], p["b_dec1"], w_dec2_p, b_dec2_p)

    res = res_p[:, :1]
    project_embed = proj_p[:, :proj_dim]
    return res, project_embed


# --------------------------------------------------------------------------
# Deterministic parameter init (synthetic encoder / decoder weights)
# --------------------------------------------------------------------------
def init_params(key, drug_feat_dim, gexpr_dim, proj_dim, dec_hidden):
    ks = jax.random.split(key, 8)

    def w(k, shape):
        fan_in = shape[0]
        return jax.random.normal(k, shape, jnp.float32) / jnp.sqrt(fan_in)

    return {
        "w_drug":  w(ks[0], (drug_feat_dim, proj_dim)),
        "b_drug":  jnp.zeros((1, proj_dim), jnp.float32),
        "w_cell":  w(ks[1], (gexpr_dim, proj_dim)),
        "b_cell":  jnp.zeros((1, proj_dim), jnp.float32),
        "w_graph": w(ks[2], (proj_dim, proj_dim)),
        "b_graph": jnp.zeros((1, proj_dim), jnp.float32),
        "w_proj1": w(ks[3], (proj_dim, proj_dim)),
        "b_proj1": jnp.zeros((1, proj_dim), jnp.float32),
        "w_proj2": w(ks[4], (proj_dim, proj_dim)),
        "b_proj2": jnp.zeros((1, proj_dim), jnp.float32),
        "w_dec1":  w(ks[5], (3 * proj_dim, dec_hidden)),
        "b_dec1":  jnp.zeros((1, dec_hidden), jnp.float32),
        "w_dec2":  w(ks[6], (dec_hidden, 1)),
        "b_dec2":  jnp.zeros((1, 1), jnp.float32),
    }


if __name__ == "__main__":
    # TODO(synk): bio_encoder / graph_encoder / decoder are constructor args of
    # the PyTorch module and not defined in the spec; synthetic GCN/MLP
    # stand-ins (above) are used for their forward passes.
    n_drug, nodes_per_drug = 4, 8
    n_nodes = n_drug * nodes_per_drug          # 32 drug-graph nodes
    drug_feat_dim = 16
    n_cell = 4
    gexpr_dim = 32
    proj_dim = 32                              # projection_dim
    dec_hidden = 32
    n_graph = n_drug + n_cell                  # merged graph size
    batch = 8                                  # synergy triplets

    key = jax.random.PRNGKey(0)
    k_in, k_par = jax.random.split(key)
    kd, kadj, kg, kA, ka, kb, kc = jax.random.split(k_in, 7)

    drug_feature = jax.random.normal(kd, (n_nodes, drug_feat_dim), jnp.float32)
    a = (jax.random.uniform(kadj, (n_nodes, n_nodes)) < 0.2).astype(jnp.float32)
    drug_adj = jnp.clip(a + a.T + jnp.eye(n_nodes), 0.0, 1.0)
    ibatch = jnp.repeat(jnp.arange(n_drug, dtype=jnp.int32), nodes_per_drug)
    gexpr_data = jax.random.normal(kg, (n_cell, gexpr_dim), jnp.float32)
    A = (jax.random.uniform(kA, (n_graph, n_graph)) < 0.4).astype(jnp.float32)
    adj = jnp.clip(A + A.T + jnp.eye(n_graph), 0.0, 1.0)
    druga_id = jax.random.randint(ka, (batch,), 0, n_drug)
    drugb_id = jax.random.randint(kb, (batch,), 0, n_drug)
    cellline_id = jax.random.randint(kc, (batch,), n_drug, n_graph)

    params = init_params(k_par, drug_feat_dim, gexpr_dim, proj_dim, dec_hidden)

    fwd = jax.jit(functools.partial(know_synergy_forward, n_drug=n_drug))
    res, project_embed = fwd(params, drug_feature, drug_adj, ibatch,
                             gexpr_data, adj, druga_id, drugb_id, cellline_id)
    jax.block_until_ready((res, project_embed))

    assert res.shape == (batch, 1)
    assert project_embed.shape == (n_graph, proj_dim)
    assert bool(jnp.all(jnp.isfinite(res))) and bool(jnp.all(jnp.isfinite(project_embed)))
    print("KERNEL_OK")
</pallas_src>

<mosaic_0001>
module attributes {stable_mosaic.version = 11 : i64} {
  func.func @_fused_forward_kernel(%arg0: memref<1x32xi32, #tpu.memory_space<vmem>>, %arg1: memref<8x1xi32, #tpu.memory_space<vmem>>, %arg2: memref<8x1xi32, #tpu.memory_space<vmem>>, %arg3: memref<8x1xi32, #tpu.memory_space<vmem>>, %arg4: memref<32x16xf32, #tpu.memory_space<vmem>>, %arg5: memref<32x32xf32, #tpu.memory_space<vmem>>, %arg6: memref<4x32xf32, #tpu.memory_space<vmem>>, %arg7: memref<8x8xf32, #tpu.memory_space<vmem>>, %arg8: memref<16x32xf32, #tpu.memory_space<vmem>>, %arg9: memref<1x32xf32, #tpu.memory_space<vmem>>, %arg10: memref<32x32xf32, #tpu.memory_space<vmem>>, %arg11: memref<1x32xf32, #tpu.memory_space<vmem>>, %arg12: memref<32x32xf32, #tpu.memory_space<vmem>>, %arg13: memref<1x32xf32, #tpu.memory_space<vmem>>, %arg14: memref<32x32xf32, #tpu.memory_space<vmem>>, %arg15: memref<1x32xf32, #tpu.memory_space<vmem>>, %arg16: memref<32x128xf32, #tpu.memory_space<vmem>>, %arg17: memref<1x128xf32, #tpu.memory_space<vmem>>, %arg18: memref<96x32xf32, #tpu.memory_space<vmem>>, %arg19: memref<1x32xf32, #tpu.memory_space<vmem>>, %arg20: memref<32x128xf32, #tpu.memory_space<vmem>>, %arg21: memref<1x128xf32, #tpu.memory_space<vmem>>, %arg22: memref<8x128xf32, #tpu.memory_space<vmem>>, %arg23: memref<8x128xf32, #tpu.memory_space<vmem>>) attributes {dimension_semantics = [], scalar_prefetch = 0 : i64, scratch_operands = 0 : i64, tpu.core_type = #tpu.core_type<tc>} {
    %c0 = arith.constant 0 : index
    %c0_0 = arith.constant 0 : index
    %0 = vector.load %arg5[%c0, %c0_0] : memref<32x32xf32, #tpu.memory_space<vmem>>, vector<32x32xf32>
    %c0_1 = arith.constant 0 : index
    %c0_2 = arith.constant 0 : index
    %1 = vector.load %arg4[%c0_1, %c0_2] : memref<32x16xf32, #tpu.memory_space<vmem>>, vector<32x16xf32>
    %2 = arith.truncf %0 : vector<32x32xf32> to vector<32x32xbf16>
    %3 = arith.truncf %1 : vector<32x16xf32> to vector<32x16xbf16>
    %cst = arith.constant dense<0.000000e+00> : vector<32x16xf32>
    %4 = tpu.matmul %2, %3, %cst {dimension_numbers = #tpu.dot_dimension_numbers<[1], [0], [0], [1], [0, 0, 1, 1], [], []>} : vector<32x32xbf16>, vector<32x16xbf16>, vector<32x16xf32> -> vector<32x16xf32>
    %c0_3 = arith.constant 0 : index
    %c0_4 = arith.constant 0 : index
    %5 = vector.load %arg8[%c0_3, %c0_4] : memref<16x32xf32, #tpu.memory_space<vmem>>, vector<16x32xf32>
    %6 = arith.truncf %4 : vector<32x16xf32> to vector<32x16xbf16>
    %7 = arith.truncf %5 : vector<16x32xf32> to vector<16x32xbf16>
    %cst_5 = arith.constant dense<0.000000e+00> : vector<32x32xf32>
    %8 = tpu.matmul %6, %7, %cst_5 {dimension_numbers = #tpu.dot_dimension_numbers<[1], [0], [0], [1], [0, 0, 1, 1], [], []>} : vector<32x16xbf16>, vector<16x32xbf16>, vector<32x32xf32> -> vector<32x32xf32>
    %c0_6 = arith.constant 0 : index
    %c0_7 = arith.constant 0 : index
    %9 = vector.load %arg9[%c0_6, %c0_7] : memref<1x32xf32, #tpu.memory_space<vmem>>, vector<1x32xf32>
    %10 = vector.broadcast %9 : vector<1x32xf32> to vector<32x32xf32>
    %11 = arith.addf %8, %10 : vector<32x32xf32>
    %cst_8 = arith.constant 0.000000e+00 : f32
    %12 = vector.broadcast %cst_8 : f32 to vector<32x32xf32>
    %13 = arith.maximumf %11, %12 : vector<32x32xf32>
    %14 = tpu.iota {dimensions = array<i32: 0>} : vector<4x32xi32>
    %c0_9 = arith.constant 0 : index
    %c0_10 = arith.constant 0 : index
    %15 = vector.load %arg0[%c0_9, %c0_10] : memref<1x32xi32, #tpu.memory_space<vmem>>, vector<1x32xi32>
    %16 = vector.broadcast %15 : vector<1x32xi32> to vector<4x32xi32>
    %17 = arith.cmpi eq, %14, %16 : vector<4x32xi32>
    %18 = arith.extui %17 : vector<4x32xi1> to vector<4x32xi32>
    %19 = arith.sitofp %18 : vector<4x32xi32> to vector<4x32xf32>
    %cst_11 = arith.constant dense<0.000000e+00> : vector<4xf32>
    %20 = vector.multi_reduction <add>, %19, %cst_11 [1] : vector<4x32xf32> to vector<4xf32>
    %21 = vector.shape_cast %20 : vector<4xf32> to vector<4x1xf32>
    %cst_12 = arith.constant 1.000000e+00 : f32
    %22 = vector.broadcast %cst_12 : f32 to vector<4x1xf32>
    %23 = arith.maximumf %21, %22 : vector<4x1xf32>
    %24 = vector.broadcast %23 : vector<4x1xf32> to vector<4x32xf32>
    %25 = arith.divf %19, %24 : vector<4x32xf32>
    %26 = arith.truncf %25 : vector<4x32xf32> to vector<4x32xbf16>
    %27 = arith.truncf %13 : vector<32x32xf32> to vector<32x32xbf16>
    %cst_13 = arith.constant dense<0.000000e+00> : vector<4x32xf32>
    %28 = tpu.matmul %26, %27, %cst_13 {dimension_numbers = #tpu.dot_dimension_numbers<[1], [0], [0], [1], [0, 0, 1, 1], [], []>} : vector<4x32xbf16>, vector<32x32xbf16>, vector<4x32xf32> -> vector<4x32xf32>
    %c0_14 = arith.constant 0 : index
    %c0_15 = arith.constant 0 : index
    %29 = vector.load %arg6[%c0_14, %c0_15] : memref<4x32xf32, #tpu.memory_space<vmem>>, vector<4x32xf32>
    %c0_16 = arith.constant 0 : index
    %c0_17 = arith.constant 0 : index
    %30 = vector.load %arg10[%c0_16, %c0_17] : memref<32x32xf32, #tpu.memory_space<vmem>>, vector<32x32xf32>
    %31 = arith.truncf %29 : vector<4x32xf32> to vector<4x32xbf16>
    %32 = arith.truncf %30 : vector<32x32xf32> to vector<32x32xbf16>
    %cst_18 = arith.constant dense<0.000000e+00> : vector<4x32xf32>
    %33 = tpu.matmul %31, %32, %cst_18 {dimension_numbers = #tpu.dot_dimension_numbers<[1], [0], [0], [1], [0, 0, 1, 1], [], []>} : vector<4x32xbf16>, vector<32x32xbf16>, vector<4x32xf32> -> vector<4x32xf32>
    %c0_19 = arith.constant 0 : index
    %c0_20 = arith.constant 0 : index
    %34 = vector.load %arg11[%c0_19, %c0_20] : memref<1x32xf32, #tpu.memory_space<vmem>>, vector<1x32xf32>
    %35 = vector.broadcast %34 : vector<1x32xf32> to vector<4x32xf32>
    %36 = arith.addf %33, %35 : vector<4x32xf32>
    %cst_21 = arith.constant 0.000000e+00 : f32
    %37 = vector.broadcast %cst_21 : f32 to vector<4x32xf32>
    %38 = arith.maximumf %36, %37 : vector<4x32xf32>
    %39 = tpu.concatenate %28, %38 in 0 : vector<4x32xf32>, vector<4x32xf32> -> vector<8x32xf32>
    %c0_22 = arith.constant 0 : index
    %c0_23 = arith.constant 0 : index
    %40 = vector.load %arg7[%c0_22, %c0_23] : memref<8x8xf32, #tpu.memory_space<vmem>>, vector<8x8xf32>
    %41 = arith.truncf %40 : vector<8x8xf32> to vector<8x8xbf16>
    %42 = arith.truncf %39 : vector<8x32xf32> to vector<8x32xbf16>
    %cst_24 = arith.constant dense<0.000000e+00> : vector<8x32xf32>
    %43 = tpu.matmul %41, %42, %cst_24 {dimension_numbers = #tpu.dot_dimension_numbers<[1], [0], [0], [1], [0, 0, 1, 1], [], []>} : vector<8x8xbf16>, vector<8x32xbf16>, vector<8x32xf32> -> vector<8x32xf32>
    %c0_25 = arith.constant 0 : index
    %c0_26 = arith.constant 0 : index
    %44 = vector.load %arg12[%c0_25, %c0_26] : memref<32x32xf32, #tpu.memory_space<vmem>>, vector<32x32xf32>
    %45 = arith.truncf %43 : vector<8x32xf32> to vector<8x32xbf16>
    %46 = arith.truncf %44 : vector<32x32xf32> to vector<32x32xbf16>
    %cst_27 = arith.constant dense<0.000000e+00> : vector<8x32xf32>
    %47 = tpu.matmul %45, %46, %cst_27 {dimension_numbers = #tpu.dot_dimension_numbers<[1], [0], [0], [1], [0, 0, 1, 1], [], []>} : vector<8x32xbf16>, vector<32x32xbf16>, vector<8x32xf32> -> vector<8x32xf32>
    %c0_28 = arith.constant 0 : index
    %c0_29 = arith.constant 0 : index
    %48 = vector.load %arg13[%c0_28, %c0_29] : memref<1x32xf32, #tpu.memory_space<vmem>>, vector<1x32xf32>
    %49 = vector.broadcast %48 : vector<1x32xf32> to vector<8x32xf32>
    %50 = arith.addf %47, %49 : vector<8x32xf32>
    %cst_30 = arith.constant 0.000000e+00 : f32
    %51 = vector.broadcast %cst_30 : f32 to vector<8x32xf32>
    %52 = arith.maximumf %50, %51 : vector<8x32xf32>
    %c0_31 = arith.constant 0 : index
    %c0_32 = arith.constant 0 : index
    %53 = vector.load %arg14[%c0_31, %c0_32] : memref<32x32xf32, #tpu.memory_space<vmem>>, vector<32x32xf32>
    %54 = arith.truncf %52 : vector<8x32xf32> to vector<8x32xbf16>
    %55 = arith.truncf %53 : vector<32x32xf32> to vector<32x32xbf16>
    %cst_33 = arith.constant dense<0.000000e+00> : vector<8x32xf32>
    %56 = tpu.matmul %54, %55, %cst_33 {dimension_numbers = #tpu.dot_dimension_numbers<[1], [0], [0], [1], [0, 0, 1, 1], [], []>} : vector<8x32xbf16>, vector<32x32xbf16>, vector<8x32xf32> -> vector<8x32xf32>
    %c0_34 = arith.constant 0 : index
    %c0_35 = arith.constant 0 : index
    %57 = vector.load %arg15[%c0_34, %c0_35] : memref<1x32xf32, #tpu.memory_space<vmem>>, vector<1x32xf32>
    %58 = vector.broadcast %57 : vector<1x32xf32> to vector<8x32xf32>
    %59 = arith.addf %56, %58 : vector<8x32xf32>
    %cst_36 = arith.constant 0.000000e+00 : f32
    %60 = vector.broadcast %cst_36 : f32 to vector<8x32xf32>
    %61 = arith.maximumf %59, %60 : vector<8x32xf32>
    %c0_37 = arith.constant 0 : index
    %c0_38 = arith.constant 0 : index
    %62 = vector.load %arg16[%c0_37, %c0_38] : memref<32x128xf32, #tpu.memory_space<vmem>>, vector<32x128xf32>
    %63 = arith.truncf %61 : vector<8x32xf32> to vector<8x32xbf16>
    %64 = arith.truncf %62 : vector<32x128xf32> to vector<32x128xbf16>
    %cst_39 = arith.constant dense<0.000000e+00> : vector<8x128xf32>
    %65 = tpu.matmul %63, %64, %cst_39 {dimension_numbers = #tpu.dot_dimension_numbers<[1], [0], [0], [1], [0, 0, 1, 1], [], []>} : vector<8x32xbf16>, vector<32x128xbf16>, vector<8x128xf32> -> vector<8x128xf32>
    %c0_40 = arith.constant 0 : index
    %c0_41 = arith.constant 0 : index
    %66 = vector.load %arg17[%c0_40, %c0_41] : memref<1x128xf32, #tpu.memory_space<vmem>>, vector<1x128xf32>
    %67 = vector.broadcast %66 : vector<1x128xf32> to vector<8x128xf32>
    %68 = arith.addf %65, %67 : vector<8x128xf32>
    %c0_42 = arith.constant 0 : index
    %c0_43 = arith.constant 0 : index
    %69 = vector.load %arg23[%c0_42, %c0_43] : memref<8x128xf32, #tpu.memory_space<vmem>>, vector<8x128xf32>
    tpu.vector_store %arg23[%c0_42, %c0_43], %68 {strides = array<i32>} : memref<8x128xf32, #tpu.memory_space<vmem>>, vector<8x128xf32>,
    %70 = tpu.iota {dimensions = array<i32: 1>} : vector<8x8xi32>
    %c0_44 = arith.constant 0 : index
    %c0_45 = arith.constant 0 : index
    %71 = vector.load %arg1[%c0_44, %c0_45] : memref<8x1xi32, #tpu.memory_space<vmem>>, vector<8x1xi32>
    %72 = vector.broadcast %71 : vector<8x1xi32> to vector<8x8xi32>
    %73 = arith.cmpi eq, %70, %72 : vector<8x8xi32>
    %74 = arith.extui %73 : vector<8x8xi1> to vector<8x8xi32>
    %75 = arith.sitofp %74 : vector<8x8xi32> to vector<8x8xf32>
    %76 = arith.truncf %75 : vector<8x8xf32> to vector<8x8xbf16>
    %77 = arith.truncf %52 : vector<8x32xf32> to vector<8x32xbf16>
    %cst_46 = arith.constant dense<0.000000e+00> : vector<8x32xf32>
    %78 = tpu.matmul %76, %77, %cst_46 {dimension_numbers = #tpu.dot_dimension_numbers<[1], [0], [0], [1], [0, 0, 1, 1], [], []>} : vector<8x8xbf16>, vector<8x32xbf16>, vector<8x32xf32> -> vector<8x32xf32>
    %c0_47 = arith.constant 0 : index
    %c0_48 = arith.constant 0 : index
    %79 = vector.load %arg2[%c0_47, %c0_48] : memref<8x1xi32, #tpu.memory_space<vmem>>, vector<8x1xi32>
    %80 = vector.broadcast %79 : vector<8x1xi32> to vector<8x8xi32>
    %81 = arith.cmpi eq, %70, %80 : vector<8x8xi32>
    %82 = arith.extui %81 : vector<8x8xi1> to vector<8x8xi32>
    %83 = arith.sitofp %82 : vector<8x8xi32> to vector<8x8xf32>
    %84 = arith.truncf %83 : vector<8x8xf32> to vector<8x8xbf16>
    %85 = arith.truncf %52 : vector<8x32xf32> to vector<8x32xbf16>
    %cst_49 = arith.constant dense<0.000000e+00> : vector<8x32xf32>
    %86 = tpu.matmul %84, %85, %cst_49 {dimension_numbers = #tpu.dot_dimension_numbers<[1], [0], [0], [1], [0, 0, 1, 1], [], []>} : vector<8x8xbf16>, vector<8x32xbf16>, vector<8x32xf32> -> vector<8x32xf32>
    %c0_50 = arith.constant 0 : index
    %c0_51 = arith.constant 0 : index
    %87 = vector.load %arg3[%c0_50, %c0_51] : memref<8x1xi32, #tpu.memory_space<vmem>>, vector<8x1xi32>
    %88 = vector.broadcast %87 : vector<8x1xi32> to vector<8x8xi32>
    %89 = arith.cmpi eq, %70, %88 : vector<8x8xi32>
    %90 = arith.extui %89 : vector<8x8xi1> to vector<8x8xi32>
    %91 = arith.sitofp %90 : vector<8x8xi32> to vector<8x8xf32>
    %92 = arith.truncf %91 : vector<8x8xf32> to vector<8x8xbf16>
    %93 = arith.truncf %52 : vector<8x32xf32> to vector<8x32xbf16>
    %cst_52 = arith.constant dense<0.000000e+00> : vector<8x32xf32>
    %94 = tpu.matmul %92, %93, %cst_52 {dimension_numbers = #tpu.dot_dimension_numbers<[1], [0], [0], [1], [0, 0, 1, 1], [], []>} : vector<8x8xbf16>, vector<8x32xbf16>, vector<8x32xf32> -> vector<8x32xf32>
    %c0_53 = arith.constant 0 : index
    %c0_54 = arith.constant 0 : index
    %95 = vector.load %arg18[%c0_53, %c0_54] : memref<96x32xf32, #tpu.memory_space<vmem>>, vector<32x32xf32>
    %96 = arith.truncf %78 : vector<8x32xf32> to vector<8x32xbf16>
    %97 = arith.truncf %95 : vector<32x32xf32> to vector<32x32xbf16>
    %cst_55 = arith.constant dense<0.000000e+00> : vector<8x32xf32>
    %98 = tpu.matmul %96, %97, %cst_55 {dimension_numbers = #tpu.dot_dimension_numbers<[1], [0], [0], [1], [0, 0, 1, 1], [], []>} : vector<8x32xbf16>, vector<32x32xbf16>, vector<8x32xf32> -> vector<8x32xf32>
    %c32 = arith.constant 32 : index
    %c0_56 = arith.constant 0 : index
    %99 = vector.load %arg18[%c32, %c0_56] : memref<96x32xf32, #tpu.memory_space<vmem>>, vector<32x32xf32>
    %100 = arith.truncf %86 : vector<8x32xf32> to vector<8x32xbf16>
    %101 = arith.truncf %99 : vector<32x32xf32> to vector<32x32xbf16>
    %cst_57 = arith.constant dense<0.000000e+00> : vector<8x32xf32>
    %102 = tpu.matmul %100, %101, %cst_57 {dimension_numbers = #tpu.dot_dimension_numbers<[1], [0], [0], [1], [0, 0, 1, 1], [], []>} : vector<8x32xbf16>, vector<32x32xbf16>, vector<8x32xf32> -> vector<8x32xf32>
    %103 = arith.addf %98, %102 : vector<8x32xf32>
    %c64 = arith.constant 64 : index
    %c0_58 = arith.constant 0 : index
    %104 = vector.load %arg18[%c64, %c0_58] : memref<96x32xf32, #tpu.memory_space<vmem>>, vector<32x32xf32>
    %105 = arith.truncf %94 : vector<8x32xf32> to vector<8x32xbf16>
    %106 = arith.truncf %104 : vector<32x32xf32> to vector<32x32xbf16>
    %cst_59 = arith.constant dense<0.000000e+00> : vector<8x32xf32>
    %107 = tpu.matmul %105, %106, %cst_59 {dimension_numbers = #tpu.dot_dimension_numbers<[1], [0], [0], [1], [0, 0, 1, 1], [], []>} : vector<8x32xbf16>, vector<32x32xbf16>, vector<8x32xf32> -> vector<8x32xf32>
    %108 = arith.addf %103, %107 : vector<8x32xf32>
    %c0_60 = arith.constant 0 : index
    %c0_61 = arith.constant 0 : index
    %109 = vector.load %arg19[%c0_60, %c0_61] : memref<1x32xf32, #tpu.memory_space<vmem>>, vector<1x32xf32>
    %110 = vector.broadcast %109 : vector<1x32xf32> to vector<8x32xf32>
    %111 = arith.addf %108, %110 : vector<8x32xf32>
    %cst_62 = arith.constant 0.000000e+00 : f32
    %112 = vector.broadcast %cst_62 : f32 to vector<8x32xf32>
    %113 = arith.maximumf %111, %112 : vector<8x32xf32>
    %c0_63 = arith.constant 0 : index
    %c0_64 = arith.constant 0 : index
    %114 = vector.load %arg20[%c0_63, %c0_64] : memref<32x128xf32, #tpu.memory_space<vmem>>, vector<32x128xf32>
    %115 = arith.truncf %113 : vector<8x32xf32> to vector<8x32xbf16>
    %116 = arith.truncf %114 : vector<32x128xf32> to vector<32x128xbf16>
    %cst_65 = arith.constant dense<0.000000e+00> : vector<8x128xf32>
    %117 = tpu.matmul %115, %116, %cst_65 {dimension_numbers = #tpu.dot_dimension_numbers<[1], [0], [0], [1], [0, 0, 1, 1], [], []>} : vector<8x32xbf16>, vector<32x128xbf16>, vector<8x128xf32> -> vector<8x128xf32>
    %c0_66 = arith.constant 0 : index
    %c0_67 = arith.constant 0 : index
    %118 = vector.load %arg21[%c0_66, %c0_67] : memref<1x128xf32, #tpu.memory_space<vmem>>, vector<1x128xf32>
    %119 = vector.broadcast %118 : vector<1x128xf32> to vector<8x128xf32>
    %120 = arith.addf %117, %119 : vector<8x128xf32>
    %121 = arith.negf %120 : vector<8x128xf32>
    %122 = math.exp %121 : vector<8x128xf32>
    %cst_68 = arith.constant 1.000000e+00 : f32
    %123 = vector.broadcast %cst_68 : f32 to vector<8x128xf32>
    %124 = arith.addf %123, %122 : vector<8x128xf32>
    %125 = arith.divf %123, %124 : vector<8x128xf32>
    %c0_69 = arith.constant 0 : index
    %c0_70 = arith.constant 0 : index
    %126 = vector.load %arg22[%c0_69, %c0_70] : memref<8x128xf32, #tpu.memory_space<vmem>>, vector<8x128xf32>
    tpu.vector_store %arg22[%c0_69, %c0_70], %125 {strides = array<i32>} : memref<8x128xf32, #tpu.memory_space<vmem>>, vector<8x128xf32>,
    return
  }
}

</mosaic_0001>

<llo_original>
// kernel: know_synergy_forward.1
$region0: #{know_synergy_forward.1}
  #allocation0 [shape = 'u32[]', space=smem, size = 0x4, offset = 0x4, fixed_abs, tag = 'smem constant byte address 0x4 - core index']
  #allocation1 [shape = 'u32[72,128]{1,0:T(1,128)}', space=vmem, size = 0x9000, scoped, tag = 'internal scratch']
  %s0 = inlined_call_operand.vmem [shape: s32[1,32], index: 0, kind: input, shape index: {}]
  %s1 = inlined_call_operand.vmem [shape: s32[8,1], index: 1, kind: input, shape index: {}]
  %s2 = inlined_call_operand.vmem [shape: s32[8,1], index: 2, kind: input, shape index: {}]
  %s3 = inlined_call_operand.vmem [shape: s32[8,1], index: 3, kind: input, shape index: {}]
  %s4 = inlined_call_operand.vmem [shape: f32[32,16], index: 4, kind: input, shape index: {}]
  %s5 = inlined_call_operand.vmem [shape: f32[32,32], index: 5, kind: input, shape index: {}]
  %s6 = inlined_call_operand.vmem [shape: f32[4,32], index: 6, kind: input, shape index: {}]
  %s7 = inlined_call_operand.vmem [shape: f32[8,8], index: 7, kind: input, shape index: {}]
  %s8 = inlined_call_operand.vmem [shape: f32[16,32], index: 8, kind: input, shape index: {}]
  %s9 = inlined_call_operand.vmem [shape: f32[1,32], index: 9, kind: input, shape index: {}]
  %s10 = inlined_call_operand.vmem [shape: f32[32,32], index: 10, kind: input, shape index: {}]
  %s11 = inlined_call_operand.vmem [shape: f32[1,32], index: 11, kind: input, shape index: {}]
  %s12 = inlined_call_operand.vmem [shape: f32[32,32], index: 12, kind: input, shape index: {}]
  %s13 = inlined_call_operand.vmem [shape: f32[1,32], index: 13, kind: input, shape index: {}]
  %s14 = inlined_call_operand.vmem [shape: f32[32,32], index: 14, kind: input, shape index: {}]
  %s15 = inlined_call_operand.vmem [shape: f32[1,32], index: 15, kind: input, shape index: {}]
  %s16 = inlined_call_operand.vmem [shape: f32[32,128], index: 16, kind: input, shape index: {}]
  %s17 = inlined_call_operand.vmem [shape: f32[1,128], index: 17, kind: input, shape index: {}]
  %s18 = inlined_call_operand.vmem [shape: f32[96,32], index: 18, kind: input, shape index: {}]
  %s19 = inlined_call_operand.vmem [shape: f32[1,32], index: 19, kind: input, shape index: {}]
  %s20 = inlined_call_operand.vmem [shape: f32[32,128], index: 20, kind: input, shape index: {}]
  %s21 = inlined_call_operand.vmem [shape: f32[1,128], index: 21, kind: input, shape index: {}]
  %s22 = inlined_call_operand.vmem [shape: f32[8,128], index: 22, kind: output, shape index: {0}]
  %s23 = inlined_call_operand.hbm [shape: f32[8,128], index: 23, kind: output, shape index: {1}]
  %24 = xla_tuple %s22, %s23
  %s25 = sld [smem:[#allocation0]]
  $region106: #{know_synergy_forward.1} parent=0
    _
  %s27 = ssub.s32 1, %s25
  %s28 = scalar_select 0, %s27, %s25
  $region1: #{know_synergy_forward.1} parent=0
    #allocation2 [shape = 'u8[4096]{0}', space=vmem, size = 0x1000, scoped, tag = 'output window, operand 1, single buffered']
    #allocation3 [shape = 's32[1]{0}', space=sflag, size = 0x4, scoped, tag = 'scoped memory for know_synergy_forward.1']
    %29 = vsyncpa [#allocation3], 0
    // Predicated region
    $region2: #{know_synergy_forward.1} parent=1 // pred_check
      _
    $region3: #{know_synergy_forward.1} parent=1 // pred_check_branch
      %31 = sbr.rel (0) target = $region5
    $region4: #{know_synergy_forward.1} parent=1 // pred_region
      _
    $region5: #{know_synergy_forward.1} parent=1 // pred_fallthru
      _
    // Predicated region
    $region6: #{know_synergy_forward.1} parent=1 // pred_check
      _
    $region7: #{know_synergy_forward.1} parent=1 // pred_check_branch
      %33 = sbr.rel (0) target = $region9
    $region8: #{know_synergy_forward.1} parent=1 // pred_region
      _
    $region9: #{know_synergy_forward.1} parent=1 // pred_fallthru
      _
    // Predicated region
    $region10: #{know_synergy_forward.1} parent=1 // pred_check
      _
    $region11: #{know_synergy_forward.1} parent=1 // pred_check_branch
      %35 = sbr.rel (0) target = $region13
    $region12: #{know_synergy_forward.1} parent=1 // pred_region
      _
    $region13: #{know_synergy_forward.1} parent=1 // pred_fallthru
      _
    // Predicated region
    $region14: #{know_synergy_forward.1} parent=1 // pred_check
      _
    $region15: #{know_synergy_forward.1} parent=1 // pred_check_branch
      %37 = sbr.rel (0) target = $region17
    $region16: #{know_synergy_forward.1} parent=1 // pred_region
      _
    $region17: #{know_synergy_forward.1} parent=1 // pred_fallthru
      _
    // Predicated region
    $region18: #{know_synergy_forward.1} parent=1 // pred_check
      _
    $region19: #{know_synergy_forward.1} parent=1 // pred_check_branch
      %39 = sbr.rel (0) target = $region21
    $region20: #{know_synergy_forward.1} parent=1 // pred_region
      _
    $region21: #{know_synergy_forward.1} parent=1 // pred_fallthru
      _
    // Predicated region
    $region22: #{know_synergy_forward.1} parent=1 // pred_check
      _
    $region23: #{know_synergy_forward.1} parent=1 // pred_check_branch
      %41 = sbr.rel (0) target = $region25
    $region24: #{know_synergy_forward.1} parent=1 // pred_region
      _
    $region25: #{know_synergy_forward.1} parent=1 // pred_fallthru
      _
    // Predicated region
    $region26: #{know_synergy_forward.1} parent=1 // pred_check
      _
    $region27: #{know_synergy_forward.1} parent=1 // pred_check_branch
      %43 = sbr.rel (0) target = $region29
    $region28: #{know_synergy_forward.1} parent=1 // pred_region
      _
    $region29: #{know_synergy_forward.1} parent=1 // pred_fallthru
      _
    // Predicated region
    $region30: #{know_synergy_forward.1} parent=1 // pred_check
      _
    $region31: #{know_synergy_forward.1} parent=1 // pred_check_branch
      %45 = sbr.rel (0) target = $region33
    $region32: #{know_synergy_forward.1} parent=1 // pred_region
      _
    $region33: #{know_synergy_forward.1} parent=1 // pred_fallthru
      _
    // Predicated region
    $region34: #{know_synergy_forward.1} parent=1 // pred_check
      _
    $region35: #{know_synergy_forward.1} parent=1 // pred_check_branch
      %47 = sbr.rel (0) target = $region37
    $region36: #{know_synergy_forward.1} parent=1 // pred_region
      _
    $region37: #{know_synergy_forward.1} parent=1 // pred_fallthru
      _
    // Predicated region
    $region38: #{know_synergy_forward.1} parent=1 // pred_check
      _
    $region39: #{know_synergy_forward.1} parent=1 // pred_check_branch
      %49 = sbr.rel (0) target = $region41
    $region40: #{know_synergy_forward.1} parent=1 // pred_region
      _
    $region41: #{know_synergy_forward.1} parent=1 // pred_fallthru
      _
    // Predicated region
    $region42: #{know_synergy_forward.1} parent=1 // pred_check
      _
    $region43: #{know_synergy_forward.1} parent=1 // pred_check_branch
      %51 = sbr.rel (0) target = $region45
    $region44: #{know_synergy_forward.1} parent=1 // pred_region
      _
    $region45: #{know_synergy_forward.1} parent=1 // pred_fallthru
      _
    // Predicated region
    $region46: #{know_synergy_forward.1} parent=1 // pred_check
      _
    $region47: #{know_synergy_forward.1} parent=1 // pred_check_branch
      %53 = sbr.rel (0) target = $region49
    $region48: #{know_synergy_forward.1} parent=1 // pred_region
      _
    $region49: #{know_synergy_forward.1} parent=1 // pred_fallthru
      _
    // Predicated region
    $region50: #{know_synergy_forward.1} parent=1 // pred_check
      _
    $region51: #{know_synergy_forward.1} parent=1 // pred_check_branch
      %55 = sbr.rel (0) target = $region53
    $region52: #{know_synergy_forward.1} parent=1 // pred_region
      _
    $region53: #{know_synergy_forward.1} parent=1 // pred_fallthru
      _
    // Predicated region
    $region54: #{know_synergy_forward.1} parent=1 // pred_check
      _
    $region55: #{know_synergy_forward.1} parent=1 // pred_check_branch
      %57 = sbr.rel (0) target = $region57
    $region56: #{know_synergy_forward.1} parent=1 // pred_region
      _
    $region57: #{know_synergy_forward.1} parent=1 // pred_fallthru
      _
    // Predicated region
    $region58: #{know_synergy_forward.1} parent=1 // pred_check
      _
    $region59: #{know_synergy_forward.1} parent=1 // pred_check_branch
      %59 = sbr.rel (0) target = $region61
    $region60: #{know_synergy_forward.1} parent=1 // pred_region
      _
    $region61: #{know_synergy_forward.1} parent=1 // pred_fallthru
      _
    // Predicated region
    $region62: #{know_synergy_forward.1} parent=1 // pred_check
      _
    $region63: #{know_synergy_forward.1} parent=1 // pred_check_branch
      %61 = sbr.rel (0) target = $region65
    $region64: #{know_synergy_forward.1} parent=1 // pred_region
      _
    $region65: #{know_synergy_forward.1} parent=1 // pred_fallthru
      _
    // Predicated region
    $region66: #{know_synergy_forward.1} parent=1 // pred_check
      _
    $region67: #{know_synergy_forward.1} parent=1 // pred_check_branch
      %63 = sbr.rel (0) target = $region69
    $region68: #{know_synergy_forward.1} parent=1 // pred_region
      _
    $region69: #{know_synergy_forward.1} parent=1 // pred_fallthru
      _
    // Predicated region
    $region70: #{know_synergy_forward.1} parent=1 // pred_check
      _
    $region71: #{know_synergy_forward.1} parent=1 // pred_check_branch
      %65 = sbr.rel (0) target = $region73
    $region72: #{know_synergy_forward.1} parent=1 // pred_region
      _
    $region73: #{know_synergy_forward.1} parent=1 // pred_fallthru
      _
    // Predicated region
    $region74: #{know_synergy_forward.1} parent=1 // pred_check
      _
    $region75: #{know_synergy_forward.1} parent=1 // pred_check_branch
      %67 = sbr.rel (0) target = $region77
    $region76: #{know_synergy_forward.1} parent=1 // pred_region
      _
    $region77: #{know_synergy_forward.1} parent=1 // pred_fallthru
      _
    // Predicated region
    $region78: #{know_synergy_forward.1} parent=1 // pred_check
      _
    $region79: #{know_synergy_forward.1} parent=1 // pred_check_branch
      %69 = sbr.rel (0) target = $region81
    $region80: #{know_synergy_forward.1} parent=1 // pred_region
      _
    $region81: #{know_synergy_forward.1} parent=1 // pred_fallthru
      _
    // Predicated region
    $region82: #{know_synergy_forward.1} parent=1 // pred_check
      _
    $region83: #{know_synergy_forward.1} parent=1 // pred_check_branch
      %71 = sbr.rel (0) target = $region85
    $region84: #{know_synergy_forward.1} parent=1 // pred_region
      _
    $region85: #{know_synergy_forward.1} parent=1 // pred_fallthru
      _
    // Predicated region
    $region86: #{know_synergy_forward.1} parent=1 // pred_check
      _
    $region87: #{know_synergy_forward.1} parent=1 // pred_check_branch
      %73 = sbr.rel (0) target = $region89
    $region88: #{know_synergy_forward.1} parent=1 // pred_region
      _
    $region89: #{know_synergy_forward.1} parent=1 // pred_fallthru
      _
    %v75 = vld [vmem:[%s5] sm:$0xff]
    %v76 = vld [vmem:[%s5 + $0x8] sm:$0xff]
    %v77 = vld [vmem:[%s5 + $0x10] sm:$0xff]
    %v78 = vld [vmem:[%s5 + $0x18] sm:$0xff]
    %v79 = vld [vmem:[%s4] sm:$0xff]
    %v80 = vld [vmem:[%s4 + $0x8] sm:$0xff]
    %v81 = vld [vmem:[%s4 + $0x10] sm:$0xff]
    %v82 = vld [vmem:[%s4 + $0x18] sm:$0xff]
    %v83 = vpack.c.bf16 %v76, %v75
    %v84 = vpack.c.bf16 %v78, %v77
    %v85 = vpack.c.bf16 %v80, %v79
    %v86 = vpack.c.bf16 %v82, %v81
    %vm87 = vcmask 261120
    %v89 = vsel %vm87, %v83, 0
    %v92 = vsel %vm87, %v84, 0
    %94 = vmatpush.bf16.msra.mxu0 0
    %95 = vmatpush.bf16.msra.mxu0 0
    %96 = vmatpush.bf16.msra.mxu0 0
    %97 = vmatpush.bf16.msra.mxu0 0
    %98 = vmatpush.bf16.msra.mxu0 0
    %99 = vmatpush.bf16.msra.mxu0 0
    %100 = vmatpush.bf16.msra.mxu0 %v86
    %101 = vmatpush.bf16.msra.mxu0 %v85
    %102 = vmatmul.bf16.gmra.mxu0 %v89
    %v103 = vpop.f32.mrf.mxu0
    %v104 = vadd.f32 0.0, %v103
    %v105 = vpop.f32.mrf.mxu0
    %v106 = vadd.f32 0.0, %v105
    %107 = vmatmul.bf16.gmra.mxu0 %v92
    %v108 = vpop.f32.mrf.mxu0
    %v109 = vadd.f32 0.0, %v108
    %v110 = vpop.f32.mrf.mxu0
    %v111 = vadd.f32 0.0, %v110
    %112 = vdwg.mxu0
    %v113 = vld [vmem:[%s8] sm:$0xff]
    %v114 = vld [vmem:[%s8 + $0x8] sm:$0xff]
    %v115 = vpack.c.bf16 %v106, %v104
    %v116 = vpack.c.bf16 %v111, %v109
    %v117 = vpack.c.bf16 %v114, %v113
    %v118 = vld [vmem:[%s9] sm:$0x1]
    %v120 = vperm.slane %v118, 0
    %vm122 = vcmask 130048
    %v124 = vsel %vm122, %v115, 0
    %v127 = vsel %vm122, %v116, 0
    %129 = vmatpush.bf16.msra.mxu0 0
    %130 = vmatpush.bf16.msra.mxu0 0
    %131 = vmatpush.bf16.msra.mxu0 0
    %132 = vmatpush.bf16.msra.mxu0 0
    %133 = vmatpush.bf16.msra.mxu0 0
    %134 = vmatpush.bf16.msra.mxu0 0
    %135 = vmatpush.bf16.msra.mxu0 0
    %136 = vmatpush.bf16.msra.mxu0 %v117
    %137 = vmatmul.bf16.gmra.mxu0 %v124
    %v138 = vpop.f32.mrf.mxu0
    %v139 = vadd.f32 %v120, %v138
    %v140 = vpop.f32.mrf.mxu0
    %v141 = vadd.f32 %v120, %v140
    %142 = vmatmul.bf16.gmra.mxu0 %v127
    %v143 = vpop.f32.mrf.mxu0
    %v144 = vadd.f32 %v120, %v143
    %v145 = vpop.f32.mrf.mxu0
    %v146 = vadd.f32 %v120, %v145
    %147 = vdwg.mxu0
    %v148 = vmax.f32 %v139, 0.0
    %v149 = vmax.f32 %v141, 0.0
    %v150 = vmax.f32 %v144, 0.0
    %v151 = vmax.f32 %v146, 0.0
    %v152 = vlaneseq
    %v153 = vshrl.u32 %v152, 7
    %v154 = vld [vmem:[%s0] sm:$0x1]
    %v155 = vperm.slane %v154, 0
    %vm156 = vcmp.eq.s32.totalorder %v153, %v155
    %v157 = vsel %vm156, 1, 0
    %v158 = vcvt.s32.f32 %v157
    %vm159 = vcmask 257024
    %v160 = vsel %vm159, %v158, 0.0
    %161 = vadd.xlane.f32.xlu0 %v160
    %v162 = vpop.xlane.xlu0 %161
    %v163 = vmax.f32 %v162, 1.0
    %v164 = vrcp.pop %v163
    %v165 = vmul.f32 %v163, %v164
    %v166 = vsub.f32 1.0, %v165
    %v167 = vmul.f32 %v164, %v166
    %v168 = vadd.f32 %v164, %v167
    %vm169 = vweird.f32 %v163
    %vm170 = vweird.f32 %v164
    %vm171 = vmor %vm169, %vm170
    %v172 = vsel %vm171, %v164, %v168
    %v173 = vand.u32 2147483647, %v163
    %vm174 = vcmp.eq.f32.partialorder %v173, 8.507059e+37
    %v175 = vand.u32 %v163, 2147483648
    %v176 = vor.u32 1.1754944e-38, %v175
    %v177 = vsel %vm174, %v176, %v172
    %v178 = vmul.f32 %v158, %v177
    %v179 = vpack.c.bf16 %v178, %v178
    %v180 = vpack.c.bf16 %v149, %v148
    %v181 = vpack.c.bf16 %v151, %v150
    %v183 = vsel %vm87, %v179, 0
    %185 = vmatpush.bf16.msra.mxu0 0
    %186 = vmatpush.bf16.msra.mxu0 0
    %187 = vmatpush.bf16.msra.mxu0 0
    %188 = vmatpush.bf16.msra.mxu0 0
    %189 = vmatpush.bf16.msra.mxu0 0
    %190 = vmatpush.bf16.msra.mxu0 0
    %191 = vmatpush.bf16.msra.mxu0 %v181
    %192 = vmatpush.bf16.msra.mxu0 %v180
    %193 = vmatmul.bf16.gmra.mxu0 %v183
    %v194 = vpop.f32.mrf.mxu0
    %v195 = vadd.f32 0.0, %v194
    %v196 = vpop.f32.mrf.mxu0
    %197 = vdwg.mxu0
    %v198 = vld [vmem:[%s6] sm:$0xf]
    %v199 = vld [vmem:[%s10] sm:$0xff]
    %v200 = vld [vmem:[%s10 + $0x8] sm:$0xff]
    %v201 = vld [vmem:[%s10 + $0x10] sm:$0xff]
    %v202 = vld [vmem:[%s10 + $0x18] sm:$0xff]
    %v203 = vpack.c.bf16 %v198, %v198
    %v204 = vpack.c.bf16 %v200, %v199
    %v205 = vpack.c.bf16 %v202, %v201
    %v206 = vld [vmem:[%s11] sm:$0x1]
    %v208 = vperm.slane %v206, 0
    %v211 = vsel %vm87, %v203, 0
    %213 = vmatpush.bf16.msra.mxu0 0
    %214 = vmatpush.bf16.msra.mxu0 0
    %215 = vmatpush.bf16.msra.mxu0 0
    %216 = vmatpush.bf16.msra.mxu0 0
    %217 = vmatpush.bf16.msra.mxu0 0
    %218 = vmatpush.bf16.msra.mxu0 0
    %219 = vmatpush.bf16.msra.mxu0 %v205
    %220 = vmatpush.bf16.msra.mxu0 %v204
    %221 = vmatmul.bf16.gmra.mxu0 %v211
    %v222 = vpop.f32.mrf.mxu0
    %v223 = vadd.f32 %v208, %v222
    %v224 = vpop.f32.mrf.mxu0
    %225 = vdwg.mxu0
    %v226 = vmax.f32 %v223, 0.0
    %v228 = vrot.slane %v226, 4
    %vm230 = vcmask 1043456
    %v231 = vsel %vm230, %v195, %v228
    %v232 = vld [vmem:[%s7] sm:$0xff]
    %v233 = vpack.c.bf16 %v232, %v232
    %v234 = vpack.c.bf16 %v231, %v231
    %vm235 = vcmask 64512
    %v237 = vsel %vm235, %v233, 0
    %v240 = vsel %vm230, %v234, 0
    %242 = vmatpush.bf16.msra.mxu0 0
    %243 = vmatpush.bf16.msra.mxu0 0
    %244 = vmatpush.bf16.msra.mxu0 0
    %245 = vmatpush.bf16.msra.mxu0 0
    %246 = vmatpush.bf16.msra.mxu0 0
    %247 = vmatpush.bf16.msra.mxu0 0
    %248 = vmatpush.bf16.msra.mxu0 0
    %249 = vmatpush.bf16.msra.mxu0 %v240
    %250 = vmatmul.bf16.gmra.mxu0 %v237
    %v251 = vpop.f32.mrf.mxu0
    %v252 = vadd.f32 0.0, %v251
    %v253 = vpop.f32.mrf.mxu0
    %254 = vdwg.mxu0
    %v255 = vld [vmem:[%s12] sm:$0xff]
    %v256 = vld [vmem:[%s12 + $0x8] sm:$0xff]
    %v257 = vld [vmem:[%s12 + $0x10] sm:$0xff]
    %v258 = vld [vmem:[%s12 + $0x18] sm:$0xff]
    %v259 = vpack.c.bf16 %v252, %v252
    %v260 = vpack.c.bf16 %v256, %v255
    %v261 = vpack.c.bf16 %v258, %v257
    %v262 = vld [vmem:[%s13] sm:$0x1]
    %v264 = vperm.slane %v262, 0
    %v267 = vsel %vm87, %v259, 0
    %269 = vmatpush.bf16.msra.mxu0 0
    %270 = vmatpush.bf16.msra.mxu0 0
    %271 = vmatpush.bf16.msra.mxu0 0
    %272 = vmatpush.bf16.msra.mxu0 0
    %273 = vmatpush.bf16.msra.mxu0 0
    %274 = vmatpush.bf16.msra.mxu0 0
    %275 = vmatpush.bf16.msra.mxu0 %v261
    %276 = vmatpush.bf16.msra.mxu0 %v260
    %277 = vmatmul.bf16.gmra.mxu0 %v267
    %v278 = vpop.f32.mrf.mxu0
    %v279 = vadd.f32 %v264, %v278
    %v280 = vpop.f32.mrf.mxu0
    %281 = vdwg.mxu0
    %v282 = vmax.f32 %v279, 0.0
    %v283 = vld [vmem:[%s14] sm:$0xff]
    %v284 = vld [vmem:[%s14 + $0x8] sm:$0xff]
    %v285 = vld [vmem:[%s14 + $0x10] sm:$0xff]
    %v286 = vld [vmem:[%s14 + $0x18] sm:$0xff]
    %v287 = vpack.c.bf16 %v282, %v282
    %v288 = vpack.c.bf16 %v284, %v283
    %v289 = vpack.c.bf16 %v286, %v285
    %v290 = vld [vmem:[%s15] sm:$0x1]
    %v292 = vperm.slane %v290, 0
    %v295 = vsel %vm87, %v287, 0
    %297 = vmatpush.bf16.msra.mxu0 0
    %298 = vmatpush.bf16.msra.mxu0 0
    %299 = vmatpush.bf16.msra.mxu0 0
    %300 = vmatpush.bf16.msra.mxu0 0
    %301 = vmatpush.bf16.msra.mxu0 0
    %302 = vmatpush.bf16.msra.mxu0 0
    %303 = vmatpush.bf16.msra.mxu0 %v289
    %304 = vmatpush.bf16.msra.mxu0 %v288
    %305 = vmatmul.bf16.gmra.mxu0 %v295
    %v306 = vpop.f32.mrf.mxu0
    %v307 = vadd.f32 %v292, %v306
    %v308 = vpop.f32.mrf.mxu0
    %309 = vdwg.mxu0
    %v310 = vmax.f32 %v307, 0.0
    %v311 = vld [vmem:[%s16] sm:$0xff]
    %v312 = vld [vmem:[%s16 + $0x8] sm:$0xff]
    %v313 = vld [vmem:[%s16 + $0x10] sm:$0xff]
    %v314 = vld [vmem:[%s16 + $0x18] sm:$0xff]
    %v315 = vpack.c.bf16 %v310, %v310
    %v316 = vpack.c.bf16 %v312, %v311
    %v317 = vpack.c.bf16 %v314, %v313
    %v318 = vld [vmem:[%s17] sm:$0x1]
    %v320 = vperm.slane %v318, 0
    %v323 = vsel %vm87, %v315, 0
    %325 = vmatpush.bf16.msra.mxu0 0
    %326 = vmatpush.bf16.msra.mxu0 0
    %327 = vmatpush.bf16.msra.mxu0 0
    %328 = vmatpush.bf16.msra.mxu0 0
    %329 = vmatpush.bf16.msra.mxu0 0
    %330 = vmatpush.bf16.msra.mxu0 0
    %331 = vmatpush.bf16.msra.mxu0 %v317
    %332 = vmatpush.bf16.msra.mxu0 %v316
    %333 = vmatmul.bf16.gmra.mxu0 %v323
    %v334 = vpop.f32.mrf.mxu0
    %v335 = vadd.f32 %v320, %v334
    %v336 = vpop.f32.mrf.mxu0
    %337 = vdwg.mxu0
    %338 = vst [vmem:[#allocation2] sm:$0xff] %v335
    %v339 = vlaneseq
    %v340 = vand.u32 %v339, 127
    %v341 = vld [vmem:[%s1] sm:$0xff]
    %342 = vset.pattern.permute.xlu0 0
    %343 = vperm.xlu0 %342, %v341
    %v344 = vpop.permute.xlu0 %343
    %vm345 = vcmp.eq.s32.totalorder %v340, %v344
    %v346 = vsel %vm345, 1, 0
    %v347 = vcvt.s32.f32 %v346
    %v348 = vpack.c.bf16 %v347, %v347
    %v350 = vsel %vm235, %v348, 0
    %v352 = vsel %vm230, %v287, 0
    %354 = vmatpush.bf16.msra.mxu0 0
    %355 = vmatpush.bf16.msra.mxu0 0
    %356 = vmatpush.bf16.msra.mxu0 0
    %357 = vmatpush.bf16.msra.mxu0 0
    %358 = vmatpush.bf16.msra.mxu0 0
    %359 = vmatpush.bf16.msra.mxu0 0
    %360 = vmatpush.bf16.msra.mxu0 0
    %361 = vmatpush.bf16.msra.mxu0 %v352
    %362 = vmatmul.bf16.gmra.mxu0 %v350
    %v363 = vpop.f32.mrf.mxu0
    %v364 = vadd.f32 0.0, %v363
    %v365 = vpop.f32.mrf.mxu0
    %366 = vdwg.mxu0
    %v367 = vld [vmem:[%s2] sm:$0xff]
    %368 = vset.pattern.permute.xlu0 0
    %369 = vperm.xlu0 %368, %v367
    %v370 = vpop.permute.xlu0 %369
    %vm371 = vcmp.eq.s32.totalorder %v340, %v370
    %v372 = vsel %vm371, 1, 0
    %v373 = vcvt.s32.f32 %v372
    %v374 = vpack.c.bf16 %v373, %v373
    %v376 = vsel %vm235, %v374, 0
    %378 = vmatpush.bf16.msra.mxu0 0
    %379 = vmatpush.bf16.msra.mxu0 0
    %380 = vmatpush.bf16.msra.mxu0 0
    %381 = vmatpush.bf16.msra.mxu0 0
    %382 = vmatpush.bf16.msra.mxu0 0
    %383 = vmatpush.bf16.msra.mxu0 0
    %384 = vmatpush.bf16.msra.mxu0 0
    %385 = vmatpush.bf16.msra.mxu0 %v352
    %386 = vmatmul.bf16.gmra.mxu0 %v376
    %v387 = vpop.f32.mrf.mxu0
    %v388 = vadd.f32 0.0, %v387
    %v389 = vpop.f32.mrf.mxu0
    %390 = vdwg.mxu0
    %v391 = vld [vmem:[%s3] sm:$0xff]
    %392 = vset.pattern.permute.xlu0 0
    %393 = vperm.xlu0 %392, %v391
    %v394 = vpop.permute.xlu0 %393
    %vm395 = vcmp.eq.s32.totalorder %v340, %v394
    %v396 = vsel %vm395, 1, 0
    %v397 = vcvt.s32.f32 %v396
    %v398 = vpack.c.bf16 %v397, %v397
    %v400 = vsel %vm235, %v398, 0
    %402 = vmatpush.bf16.msra.mxu0 0
    %403 = vmatpush.bf16.msra.mxu0 0
    %404 = vmatpush.bf16.msra.mxu0 0
    %405 = vmatpush.bf16.msra.mxu0 0
    %406 = vmatpush.bf16.msra.mxu0 0
    %407 = vmatpush.bf16.msra.mxu0 0
    %408 = vmatpush.bf16.msra.mxu0 0
    %409 = vmatpush.bf16.msra.mxu0 %v352
    %410 = vmatmul.bf16.gmra.mxu0 %v400
    %v411 = vpop.f32.mrf.mxu0
    %v412 = vadd.f32 0.0, %v411
    %v413 = vpop.f32.mrf.mxu0
    %414 = vdwg.mxu0
    %v415 = vld [vmem:[%s18] sm:$0xff]
    %v416 = vld [vmem:[%s18 + $0x8] sm:$0xff]
    %v417 = vld [vmem:[%s18 + $0x10] sm:$0xff]
    %v418 = vld [vmem:[%s18 + $0x18] sm:$0xff]
    %v419 = vpack.c.bf16 %v364, %v364
    %v420 = vpack.c.bf16 %v416, %v415
    %v421 = vpack.c.bf16 %v418, %v417
    %v422 = vld [vmem:[%s18 + $0x20] sm:$0xff]
    %v423 = vld [vmem:[%s18 + $0x28] sm:$0xff]
    %v424 = vld [vmem:[%s18 + $0x30] sm:$0xff]
    %v425 = vld [vmem:[%s18 + $0x38] sm:$0xff]
    %v426 = vpack.c.bf16 %v388, %v388
    %v427 = vpack.c.bf16 %v423, %v422
    %v428 = vpack.c.bf16 %v425, %v424
    %v430 = vsel %vm87, %v426, 0
    %432 = vmatpush.bf16.msra.mxu0 0
    %433 = vmatpush.bf16.msra.mxu0 0
    %434 = vmatpush.bf16.msra.mxu0 0
    %435 = vmatpush.bf16.msra.mxu0 0
    %436 = vmatpush.bf16.msra.mxu0 0
    %437 = vmatpush.bf16.msra.mxu0 0
    %438 = vmatpush.bf16.msra.mxu0 %v428
    %439 = vmatpush.bf16.msra.mxu0 %v427
    %440 = vmatmul.bf16.gmra.mxu0 %v430
    %v441 = vpop.f32.mrf.mxu0
    %v442 = vadd.f32 0.0, %v441
    %v443 = vpop.f32.mrf.mxu0
    %444 = vdwg.mxu0
    %v446 = vsel %vm87, %v419, 0
    %448 = vmatpush.bf16.msra.mxu0 0
    %449 = vmatpush.bf16.msra.mxu0 0
    %450 = vmatpush.bf16.msra.mxu0 0
    %451 = vmatpush.bf16.msra.mxu0 0
    %452 = vmatpush.bf16.msra.mxu0 0
    %453 = vmatpush.bf16.msra.mxu0 0
    %454 = vmatpush.bf16.msra.mxu0 %v421
    %455 = vmatpush.bf16.msra.mxu0 %v420
    %456 = vmatmul.bf16.gmra.mxu0 %v446
    %v457 = vpop.f32.mrf.mxu0
    %v458 = vadd.f32 %v442, %v457
    %v459 = vpop.f32.mrf.mxu0
    %460 = vdwg.mxu0
    %v461 = vld [vmem:[%s18 + $0x40] sm:$0xff]
    %v462 = vld [vmem:[%s18 + $0x48] sm:$0xff]
    %v463 = vld [vmem:[%s18 + $0x50] sm:$0xff]
    %v464 = vld [vmem:[%s18 + $0x58] sm:$0xff]
    %v465 = vpack.c.bf16 %v412, %v412
    %v466 = vpack.c.bf16 %v462, %v461
    %v467 = vpack.c.bf16 %v464, %v463
    %v469 = vsel %vm87, %v465, 0
    %471 = vmatpush.bf16.msra.mxu0 0
    %472 = vmatpush.bf16.msra.mxu0 0
    %473 = vmatpush.bf16.msra.mxu0 0
    %474 = vmatpush.bf16.msra.mxu0 0
    %475 = vmatpush.bf16.msra.mxu0 0
    %476 = vmatpush.bf16.msra.mxu0 0
    %477 = vmatpush.bf16.msra.mxu0 %v467
    %478 = vmatpush.bf16.msra.mxu0 %v466
    %479 = vmatmul.bf16.gmra.mxu0 %v469
    %v480 = vpop.f32.mrf.mxu0
    %v481 = vadd.f32 0.0, %v480
    %v482 = vpop.f32.mrf.mxu0
    %483 = vdwg.mxu0
    %v484 = vadd.f32 %v458, %v481
    %v485 = vld [vmem:[%s19] sm:$0x1]
    %v487 = vperm.slane %v485, 0
    %v489 = vadd.f32 %v484, %v487
    %v490 = vmax.f32 %v489, 0.0
    %v491 = vld [vmem:[%s20] sm:$0xff]
    %v492 = vld [vmem:[%s20 + $0x8] sm:$0xff]
    %v493 = vld [vmem:[%s20 + $0x10] sm:$0xff]
    %v494 = vld [vmem:[%s20 + $0x18] sm:$0xff]
    %v495 = vpack.c.bf16 %v490, %v490
    %v496 = vpack.c.bf16 %v492, %v491
    %v497 = vpack.c.bf16 %v494, %v493
    %v498 = vld [vmem:[%s21] sm:$0x1]
    %v500 = vperm.slane %v498, 0
    %v503 = vsel %vm87, %v495, 0
    %505 = vmatpush.bf16.msra.mxu0 0
    %506 = vmatpush.bf16.msra.mxu0 0
    %507 = vmatpush.bf16.msra.mxu0 0
    %508 = vmatpush.bf16.msra.mxu0 0
    %509 = vmatpush.bf16.msra.mxu0 0
    %510 = vmatpush.bf16.msra.mxu0 0
    %511 = vmatpush.bf16.msra.mxu0 %v497
    %512 = vmatpush.bf16.msra.mxu0 %v496
    %513 = vmatmul.bf16.gmra.mxu0 %v503
    %v514 = vpop.f32.mrf.mxu0
    %v515 = vadd.f32 %v500, %v514
    %v516 = vpop.f32.mrf.mxu0
    %517 = vdwg.mxu0
    %v518 = vxor.u32 %v515, 2147483648
    %v519 = vmul.f32 %v518, 1.442695
    %v520 = vpow.pop %v519
    %v521 = vadd.f32 %v520, 1.0
    %v522 = vrcp.pop %v521
    %v523 = vmul.f32 %v521, %v522
    %v524 = vsub.f32 1.0, %v523
    %v525 = vmul.f32 %v522, %v524
    %v526 = vadd.f32 %v522, %v525
    %vm527 = vweird.f32 %v521
    %vm528 = vweird.f32 %v522
    %vm529 = vmor %vm527, %vm528
    %v530 = vsel %vm529, %v522, %v526
    %v531 = vand.u32 2147483647, %v521
    %vm532 = vcmp.eq.f32.partialorder %v531, 8.507059e+37
    %v533 = vand.u32 %v521, 2147483648
    %v534 = vor.u32 1.1754944e-38, %v533
    %v535 = vsel %vm532, %v534, %v530
    %v536 = vmul.f32 1.0, %v535
    %537 = vst [vmem:[%s22] sm:$0xff] %v536
    // Predicated region
    $region90: #{know_synergy_forward.1} parent=1 // pred_check
      _
    $region91: #{know_synergy_forward.1} parent=1 // pred_check_branch
      %539 = sbr.rel (0) target = $region93
    $region92: #{know_synergy_forward.1} parent=1 // pred_region
      _
    $region93: #{know_synergy_forward.1} parent=1 // pred_fallthru
      _
    // Predicated region
    $region94: #{know_synergy_forward.1} parent=1 // pred_check
      _
    $region95: #{know_synergy_forward.1} parent=1 // pred_check_branch
      %541 = sbr.rel (0) target = $region97
    $region96: #{know_synergy_forward.1} parent=1 // pred_region
      %543 = vsyncadd [#allocation3], 0
      %s545 = sshll.u32 [#allocation2], 4
      %s546 = int_to_ptr.vmem [resolvable:$true] %s545
      %s547 = sshll.u32 %s23, 4
      %s548 = int_to_ptr.hbm [resolvable:$true] %s547
      %550 = dma.vmem_to_hbm [thread:$0]  %s546, 128, %s548, [#allocation3]
    $region97: #{know_synergy_forward.1} parent=1 // pred_fallthru
      _
    // Predicated region
    $region98: #{know_synergy_forward.1} parent=1 // pred_check
      _
    $region99: #{know_synergy_forward.1} parent=1 // pred_check_branch
      %552 = sbr.rel (0) target = $region101
    $region100: #{know_synergy_forward.1} parent=1 // pred_region
      _
    $region101: #{know_synergy_forward.1} parent=1 // pred_fallthru
      _
    // Predicated region
    $region102: #{know_synergy_forward.1} parent=1 // pred_check
      _
    $region103: #{know_synergy_forward.1} parent=1 // pred_check_branch
      %554 = sbr.rel (0) target = $region105
    $region104: #{know_synergy_forward.1} parent=1 // pred_region
      %556 = dma.done [#allocation3], 128
    $region105: #{know_synergy_forward.1} parent=1 // pred_fallthru
      _
    %557 = vsyncpa [#allocation3], 1

</llo_original>
